<compile_context>
chip_gen: v7x
topology: tpu7x:2x2x1
jax: 0.10.0
libtpu: 0.0.40
codegen_flags: <defaults>
</compile_context>

<pallas_src>
import jax
import jax.numpy as jnp
from jax.experimental import pallas as pl
from jax.experimental.pallas import tpu as pltpu

NUM_FEATURE = 16
NUM_LAYERS = 3
BATCH = 8
LANE = 128          # TPU lane width
MAX_TB = 2048       # max batch tile (lanes per grid step)


def cross_kernel(p_ref, x_ref, out_ref):
    """p_ref: (d, 2L) packed [w_0..w_{L-1} | b_0..b_{L-1}] as columns.
       x_ref/out_ref: (d, TB) activation tiles, batch on lanes."""
    num_layers = p_ref.shape[1] // 2
    x0 = x_ref[...]                       # (d, TB) float32
    x = x0
    for i in range(num_layers):           # static, unrolled
        w_i = p_ref[:, i:i + 1]                       # (d, 1) weight column
        b_i = p_ref[:, num_layers + i:num_layers + i + 1]  # (d, 1) bias column
        # x_i @ w_i  ==  per-example dot over features: VPU mul + sublane reduce.
        xw = jnp.sum(x * w_i, axis=0, keepdims=True)  # (1, TB)
        x = x + xw * x0 + b_i                         # lane-dense VPU ops
    out_ref[...] = x


def cross_network_v1_forward(x, cw, cb, *, tb=None):
    """x: (B, d).  cw: (d, L) stacked weights.  cb: (L, d) stacked biases."""
    B, d = x.shape
    num_layers = cw.shape[1]

    if tb is None:
        tb = max(LANE, min(MAX_TB, pl.cdiv(B, LANE) * LANE))
    b_pad = pl.cdiv(B, tb) * tb

    # Layout plumbing: batch -> lanes, zero-pad batch to a tile multiple.
    xt = jnp.pad(x.astype(jnp.float32).T, ((0, 0), (0, b_pad - B)))   # (d, B_pad)
    # Pack all params into one lane-contiguous buffer -> single DMA.
    packed = jnp.concatenate([cw, cb.T], axis=1).astype(jnp.float32)  # (d, 2L)

    grid = (b_pad // tb,)
    out_t = pl.pallas_call(
        cross_kernel,
        out_shape=jax.ShapeDtypeStruct((d, b_pad), jnp.float32),
        grid_spec=pltpu.PrefetchScalarGridSpec(
            num_scalar_prefetch=0,
            grid=grid,
            in_specs=[
                # Params: constant index_map -> fetched once, stays resident.
                pl.BlockSpec((d, 2 * num_layers), lambda i: (0, 0)),
                # Activations: stream one (d, TB) batch tile per grid step.
                pl.BlockSpec((d, tb), lambda i: (0, i)),
            ],
            out_specs=pl.BlockSpec((d, tb), lambda i: (0, i)),
        ),
        compiler_params=pltpu.CompilerParams(
            dimension_semantics=("parallel",)),   # lets v7x use both TCs
    )(packed, xt)

    return out_t[:, :B].T                          # back to (B, d)


def make_params(key, d, num_layers):
    k_w, k_b = jax.random.split(key)
    # torch.randn initializers in the reference module.
    cw = jax.random.normal(k_w, (d, num_layers), jnp.float32)   # w_i = cw[:, i:i+1]
    cb = jax.random.normal(k_b, (num_layers, d), jnp.float32)   # b_i = cb[i]
    return cw, cb


def cross_network_v1_reference(x, cw, cb):
    x0 = x
    xc = x
    for i in range(cw.shape[1]):
        xw = xc @ cw[:, i:i + 1]        # (B, 1)
        xc = xc + xw * x0 + cb[i]       # broadcast bias over batch
    return xc


if __name__ == "__main__":
    key = jax.random.PRNGKey(0)
    k_x, k_p = jax.random.split(key)
    x = jax.random.normal(k_x, (BATCH, NUM_FEATURE), jnp.float32)
    cw, cb = make_params(k_p, NUM_FEATURE, NUM_LAYERS)

    out = cross_network_v1_forward(x, cw, cb)
    out = jax.block_until_ready(out)

    ref = cross_network_v1_reference(x, cw, cb)
    assert out.shape == (BATCH, NUM_FEATURE)
    assert jnp.allclose(out, ref, atol=1e-4, rtol=1e-4)
    print("KERNEL_OK")
</pallas_src>

<mosaic_0001>
module attributes {stable_mosaic.version = 11 : i64} {
  func.func @cross_kernel(%arg0: i32, %arg1: memref<16x6xf32, #tpu.memory_space<vmem>>, %arg2: memref<16x128xf32, #tpu.memory_space<vmem>>, %arg3: memref<16x128xf32, #tpu.memory_space<vmem>>) attributes {dimension_semantics = [#tpu.dimension_semantics<parallel>], iteration_bounds = array<i64: 1>, scalar_prefetch = 0 : i64, scratch_operands = 0 : i64, tpu.core_type = #tpu.core_type<tc>, window_params = [{pipeline_mode = #tpu.pipeline_mode<synchronous>, transform_indices = @transform_0, window_bounds = array<i64: 16, 6>}, {transform_indices = @transform_1, window_bounds = array<i64: 16, 128>}, {transform_indices = @transform_2, window_bounds = array<i64: 16, 128>}]} {
    %c0 = arith.constant 0 : index
    %c0_0 = arith.constant 0 : index
    %0 = vector.load %arg2[%c0, %c0_0] : memref<16x128xf32, #tpu.memory_space<vmem>>, vector<16x128xf32>
    %c0_1 = arith.constant 0 : index
    %c0_2 = arith.constant 0 : index
    %1 = vector.load %arg1[%c0_1, %c0_2] : memref<16x6xf32, #tpu.memory_space<vmem>>, vector<16x1xf32>
    %c0_3 = arith.constant 0 : index
    %c3 = arith.constant 3 : index
    %2 = vector.load %arg1[%c0_3, %c3] : memref<16x6xf32, #tpu.memory_space<vmem>>, vector<16x1xf32>
    %3 = vector.broadcast %1 : vector<16x1xf32> to vector<16x128xf32>
    %4 = arith.mulf %0, %3 : vector<16x128xf32>
    %cst = arith.constant dense<0.000000e+00> : vector<128xf32>
    %5 = vector.multi_reduction <add>, %4, %cst [0] : vector<16x128xf32> to vector<128xf32>
    %6 = vector.shape_cast %5 : vector<128xf32> to vector<1x128xf32>
    %7 = vector.broadcast %6 : vector<1x128xf32> to vector<16x128xf32>
    %8 = arith.mulf %7, %0 : vector<16x128xf32>
    %9 = arith.addf %0, %8 : vector<16x128xf32>
    %10 = vector.broadcast %2 : vector<16x1xf32> to vector<16x128xf32>
    %11 = arith.addf %9, %10 : vector<16x128xf32>
    %c0_4 = arith.constant 0 : index
    %c1 = arith.constant 1 : index
    %12 = vector.load %arg1[%c0_4, %c1] : memref<16x6xf32, #tpu.memory_space<vmem>>, vector<16x1xf32>
    %c0_5 = arith.constant 0 : index
    %c4 = arith.constant 4 : index
    %13 = vector.load %arg1[%c0_5, %c4] : memref<16x6xf32, #tpu.memory_space<vmem>>, vector<16x1xf32>
    %14 = vector.broadcast %12 : vector<16x1xf32> to vector<16x128xf32>
    %15 = arith.mulf %11, %14 : vector<16x128xf32>
    %cst_6 = arith.constant dense<0.000000e+00> : vector<128xf32>
    %16 = vector.multi_reduction <add>, %15, %cst_6 [0] : vector<16x128xf32> to vector<128xf32>
    %17 = vector.shape_cast %16 : vector<128xf32> to vector<1x128xf32>
    %18 = vector.broadcast %17 : vector<1x128xf32> to vector<16x128xf32>
    %19 = arith.mulf %18, %0 : vector<16x128xf32>
    %20 = arith.addf %11, %19 : vector<16x128xf32>
    %21 = vector.broadcast %13 : vector<16x1xf32> to vector<16x128xf32>
    %22 = arith.addf %20, %21 : vector<16x128xf32>
    %c0_7 = arith.constant 0 : index
    %c2 = arith.constant 2 : index
    %23 = vector.load %arg1[%c0_7, %c2] : memref<16x6xf32, #tpu.memory_space<vmem>>, vector<16x1xf32>
    %c0_8 = arith.constant 0 : index
    %c5 = arith.constant 5 : index
    %24 = vector.load %arg1[%c0_8, %c5] : memref<16x6xf32, #tpu.memory_space<vmem>>, vector<16x1xf32>
    %25 = vector.broadcast %23 : vector<16x1xf32> to vector<16x128xf32>
    %26 = arith.mulf %22, %25 : vector<16x128xf32>
    %cst_9 = arith.constant dense<0.000000e+00> : vector<128xf32>
    %27 = vector.multi_reduction <add>, %26, %cst_9 [0] : vector<16x128xf32> to vector<128xf32>
    %28 = vector.shape_cast %27 : vector<128xf32> to vector<1x128xf32>
    %29 = vector.broadcast %28 : vector<1x128xf32> to vector<16x128xf32>
    %30 = arith.mulf %29, %0 : vector<16x128xf32>
    %31 = arith.addf %22, %30 : vector<16x128xf32>
    %32 = vector.broadcast %24 : vector<16x1xf32> to vector<16x128xf32>
    %33 = arith.addf %31, %32 : vector<16x128xf32>
    %c0_10 = arith.constant 0 : index
    %c0_11 = arith.constant 0 : index
    %34 = vector.load %arg3[%c0_10, %c0_11] : memref<16x128xf32, #tpu.memory_space<vmem>>, vector<16x128xf32>
    tpu.vector_store %arg3[%c0_10, %c0_11], %33 {strides = array<i32>} : memref<16x128xf32, #tpu.memory_space<vmem>>, vector<16x128xf32>,
    return
  }
  func.func @transform_0(%arg0: i32) -> (i32, i32) {
    %c0_i32 = arith.constant 0 : i32
    %c0_i32_0 = arith.constant 0 : i32
    %c0_i32_1 = arith.constant 0 : i32
    return %c0_i32, %c0_i32_0 : i32, i32
  }
  func.func @transform_1(%arg0: i32) -> (i32, i32) {
    %c0_i32 = arith.constant 0 : i32
    %c0_i32_0 = arith.constant 0 : i32
    return %c0_i32, %arg0 : i32, i32
  }
  func.func @transform_2(%arg0: i32) -> (i32, i32) {
    %c0_i32 = arith.constant 0 : i32
    %c0_i32_0 = arith.constant 0 : i32
    return %c0_i32, %arg0 : i32, i32
  }
}

</mosaic_0001>

<llo_original>
// kernel: tpu_custom_call.1
$region0: #{tpu_custom_call.1}
  #allocation0 [shape = 'u32[]', space=smem, size = 0x4, offset = 0x4, fixed_abs, tag = 'smem constant byte address 0x4 - core index']
  #allocation1 [shape = 'u32[144,128]{1,0:T(1,128)}', space=vmem, size = 0x12000, scoped, tag = 'internal scratch']
  %s0 = inlined_call_operand.vmem [shape: f32[16,6], index: 0, kind: input, shape index: {}]
  %s1 = inlined_call_operand.vmem [shape: f32[16,128], index: 1, kind: input, shape index: {}]
  %s2 = inlined_call_operand.hbm [shape: f32[16,128], index: 2, kind: output, shape index: {}]
  %s3 = sld [smem:[#allocation0]]
  $region18: #{tpu_custom_call.1} parent=0
    _
  %s5 = ssub.s32 1, %s3
  %s6 = scalar_select 0, %s5, %s3
  $region1: #{tpu_custom_call.1} parent=0
    #allocation2 [shape = 'u8[8192]{0}', space=vmem, size = 0x2000, scoped, tag = 'output window, operand 0, single buffered']
    #allocation3 [shape = 's32[1]{0}', space=sflag, size = 0x4, scoped, tag = 'scoped memory for tpu_custom_call.1']
    %7 = vsyncpa [#allocation3], 0
    // Predicated region
    $region2: #{tpu_custom_call.1} parent=1 // pred_check
      _
    $region3: #{tpu_custom_call.1} parent=1 // pred_check_branch
      %9 = sbr.rel (0) target = $region5
    $region4: #{tpu_custom_call.1} parent=1 // pred_region
      _
    $region5: #{tpu_custom_call.1} parent=1 // pred_fallthru
      _
    // Predicated region
    $region6: #{tpu_custom_call.1} parent=1 // pred_check
      _
    $region7: #{tpu_custom_call.1} parent=1 // pred_check_branch
      %11 = sbr.rel (0) target = $region9
    $region8: #{tpu_custom_call.1} parent=1 // pred_region
      _
    $region9: #{tpu_custom_call.1} parent=1 // pred_fallthru
      _
    %v12 = vld [vmem:[%s1] sm:$0xff]
    %v13 = vld [vmem:[%s1 + $0x8] sm:$0xff]
    %v14 = vld [vmem:[%s0] sm:$0xff]
    %v15 = vld [vmem:[%s0 + $0x8] sm:$0xff]
    %17 = vset.pattern.permute.xlu0 0
    %18 = vperm.xlu0 %17, %v14
    %v19 = vpop.permute.xlu0 %18
    %22 = vset.pattern.permute.xlu0 0
    %23 = vperm.xlu0 %22, %v15
    %v24 = vpop.permute.xlu0 %23
    %v26 = vmul.f32 %v12, %v19
    %v27 = vmul.f32 %v13, %v24
    %v28 = vadd.f32 %v26, %v27
    %v29 = vrot.slane %v28, 4
    %v30 = vadd.f32 %v28, %v29
    %v31 = vrot.slane %v30, 2
    %v32 = vadd.f32 %v30, %v31
    %v33 = vrot.slane %v32, 1
    %v34 = vadd.f32 %v32, %v33
    %v35 = vmul.f32 %v34, %v12
    %v36 = vmul.f32 %v34, %v13
    %v37 = vadd.f32 %v12, %v35
    %v38 = vadd.f32 %v13, %v36
    %39 = vset.pattern.permute.xlu0 3
    %40 = vperm.xlu0 %39, %v14
    %v41 = vpop.permute.xlu0 %40
    %43 = vset.pattern.permute.xlu0 3
    %44 = vperm.xlu0 %43, %v15
    %v45 = vpop.permute.xlu0 %44
    %v47 = vadd.f32 %v37, %v41
    %v48 = vadd.f32 %v38, %v45
    %49 = vset.pattern.permute.xlu0 1
    %50 = vperm.xlu0 %49, %v14
    %v51 = vpop.permute.xlu0 %50
    %53 = vset.pattern.permute.xlu0 1
    %54 = vperm.xlu0 %53, %v15
    %v55 = vpop.permute.xlu0 %54
    %v57 = vmul.f32 %v47, %v51
    %v58 = vmul.f32 %v48, %v55
    %v59 = vadd.f32 %v57, %v58
    %v60 = vrot.slane %v59, 4
    %v61 = vadd.f32 %v59, %v60
    %v62 = vrot.slane %v61, 2
    %v63 = vadd.f32 %v61, %v62
    %v64 = vrot.slane %v63, 1
    %v65 = vadd.f32 %v63, %v64
    %v66 = vmul.f32 %v65, %v12
    %v67 = vmul.f32 %v65, %v13
    %v68 = vadd.f32 %v47, %v66
    %v69 = vadd.f32 %v48, %v67
    %70 = vset.pattern.permute.xlu0 4
    %71 = vperm.xlu0 %70, %v14
    %v72 = vpop.permute.xlu0 %71
    %74 = vset.pattern.permute.xlu0 4
    %75 = vperm.xlu0 %74, %v15
    %v76 = vpop.permute.xlu0 %75
    %v78 = vadd.f32 %v68, %v72
    %v79 = vadd.f32 %v69, %v76
    %80 = vset.pattern.permute.xlu0 2
    %81 = vperm.xlu0 %80, %v14
    %v82 = vpop.permute.xlu0 %81
    %84 = vset.pattern.permute.xlu0 2
    %85 = vperm.xlu0 %84, %v15
    %v86 = vpop.permute.xlu0 %85
    %v88 = vmul.f32 %v78, %v82
    %v89 = vmul.f32 %v79, %v86
    %v90 = vadd.f32 %v88, %v89
    %v91 = vrot.slane %v90, 4
    %v92 = vadd.f32 %v90, %v91
    %v93 = vrot.slane %v92, 2
    %v94 = vadd.f32 %v92, %v93
    %v95 = vrot.slane %v94, 1
    %v96 = vadd.f32 %v94, %v95
    %v97 = vmul.f32 %v96, %v12
    %v98 = vmul.f32 %v96, %v13
    %v99 = vadd.f32 %v78, %v97
    %v100 = vadd.f32 %v79, %v98
    %101 = vset.pattern.permute.xlu0 5
    %102 = vperm.xlu0 %101, %v14
    %v103 = vpop.permute.xlu0 %102
    %105 = vset.pattern.permute.xlu0 5
    %106 = vperm.xlu0 %105, %v15
    %v107 = vpop.permute.xlu0 %106
    %v109 = vadd.f32 %v99, %v103
    %v110 = vadd.f32 %v100, %v107
    %111 = vst [vmem:[#allocation2] sm:$0xff] %v109
    %112 = vst [vmem:[#allocation2 + $0x8] sm:$0xff] %v110
    // Predicated region
    $region10: #{tpu_custom_call.1} parent=1 // pred_check
      _
    $region11: #{tpu_custom_call.1} parent=1 // pred_check_branch
      %114 = sbr.rel (0) target = $region13
    $region12: #{tpu_custom_call.1} parent=1 // pred_region
      %s116 = ssub.s32 256, 256
      %117 = vsyncadd [#allocation3], %s116
      %s118 = sshll.u32 [#allocation2], 4
      %s119 = int_to_ptr.vmem [resolvable:$true] %s118
      %124 = dma.vmem_to_hbm [thread:$0]  %s119, 256, %s2, [#allocation3], 128, 128, 8
    $region13: #{tpu_custom_call.1} parent=1 // pred_fallthru
      _
    // Predicated region
    $region14: #{tpu_custom_call.1} parent=1 // pred_check
      _
    $region15: #{tpu_custom_call.1} parent=1 // pred_check_branch
      %126 = sbr.rel (0) target = $region17
    $region16: #{tpu_custom_call.1} parent=1 // pred_region
      %127 = dma.done [#allocation3], 256
    $region17: #{tpu_custom_call.1} parent=1 // pred_fallthru
      _
    %128 = vsyncpa [#allocation3], 1

</llo_original>
